<compile_context>
chip_gen: v5e
topology: v5e:2x2
jax: 0.10.0
libtpu: 0.0.40
codegen_flags: <defaults>
</compile_context>

<pallas_src>
import jax
import jax.numpy as jnp
from jax import lax
from jax.experimental import pallas as pl
from jax.experimental.pallas import tpu as pltpu

INPUT_SIZE = 3
HIDDEN_SIZE = 4

LANE = 128                      # hidden dim padded to one full lane tile
SUBLANE = 8                     # batch dim padded to sublane multiples
MAX_B_TILE = 64                 # max batch rows per block (sublane dim) before grid-splitting
MAX_SEQ_CHUNK = 512             # max timesteps per grid step
UNROLL = 8                      # partial unroll of the recurrence loop
VMEM_BLOCK_BUDGET = 24 << 20    # budget for the 4 double-buffered xw/out blocks


def _round_up(n, m):
    return ((n + m - 1) // m) * m


def _rnn_kernel(xw_ref, whh_t_ref, out_ref, h_scratch):
    """Elman recurrence over one (batch-tile, sequence-chunk): h_t = tanh(xw_t + h_{t-1} @ W_hh^T).

    xw_ref    : (chunk, B_tile, H_pad)  pre-projected inputs (x_t @ W_ih^T)
    whh_t_ref : (H_pad, H_pad)          W_hh^T, zero-padded
    out_ref   : (chunk, B_tile, H_pad)  hidden state per timestep
    h_scratch : (B_tile, H_pad)         hidden carried across sequence chunks
    """
    c = pl.program_id(1)        # sequence-chunk index (serial / "arbitrary" axis)

    @pl.when(c == 0)
    def _():
        # Fresh hidden state at the start of every batch tile's sequence.
        h_scratch[...] = jnp.zeros_like(h_scratch)

    # Load the recurrent weight ONCE per chunk, outside the timestep loop, so it is
    # not re-fetched on the serial critical path.
    whh = whh_t_ref[...]                      # (H_pad, H_pad)
    chunk = xw_ref.shape[0]

    def step(t, h):
        z = xw_ref[t] + jnp.dot(h, whh, preferred_element_type=jnp.float32)
        h_new = jnp.tanh(z)
        out_ref[t] = h_new.astype(out_ref.dtype)
        return h_new

    # h carried in vregs across the whole chunk; partially unrolled for LLO visibility
    # while keeping code size bounded at large chunks.
    h_final = lax.fori_loop(0, chunk, step, h_scratch[...], unroll=UNROLL)
    h_scratch[...] = h_final


def torch_rnn_forward(x, w_ih, w_hh):
    """Equivalent of TorchRNN.forward: returns (output, h_n).

    x    : (B, S, input_size) float32
    w_ih : (hidden, input_size)   -- nn.RNN weight_ih_l0
    w_hh : (hidden, hidden)       -- nn.RNN weight_hh_l0
    """
    B, S, I = x.shape
    H = w_ih.shape[0]
    H_pad = LANE

    # --- Batch tiling: keep rows in the sublane dim up to MAX_B_TILE, split the rest
    # across a leading "parallel" grid axis (megacore on v7x). -----------------------
    B_pad = _round_up(max(B, SUBLANE), SUBLANE)
    if B_pad <= MAX_B_TILE:
        b_tile = B_pad
    else:
        b_tile = MAX_B_TILE
        B_pad = _round_up(B_pad, b_tile)
    num_b_tiles = B_pad // b_tile

    # --- Sequence chunk: big enough to amortize per-grid-step overhead, bounded by the
    # VMEM budget (2 in + 2 out double-buffered blocks). -----------------------------
    max_chunk_by_vmem = VMEM_BLOCK_BUDGET // (4 * b_tile * H_pad * 4)
    chunk = max(1, min(S, MAX_SEQ_CHUNK, max_chunk_by_vmem))
    S_pad = _round_up(S, chunk)
    num_chunks = S_pad // chunk

    # --- Hoisted input projection: ONE batched matmul for all timesteps, produced
    # directly time-major into the padded (S_pad, B_pad, H_pad) buffer. Only x (tiny)
    # and W_ih are padded beforehand, so no big mostly-zero buffer is written/read as
    # a separate XLA op. --------------------------------------------------------------
    x_pad = jnp.zeros((B_pad, S_pad, I), jnp.float32).at[:B, :S, :].set(x)
    w_ih_pad = jnp.zeros((H_pad, I), jnp.float32).at[:H, :].set(w_ih)
    xw_pad = jnp.einsum("bsi,hi->sbh", x_pad, w_ih_pad,
                        preferred_element_type=jnp.float32)       # (S_pad, B_pad, H_pad)
    whh_t = jnp.zeros((H_pad, H_pad), jnp.float32).at[:H, :H].set(w_hh.T)

    # Resident VMEM: double-buffered xw + out chunks, weights, h scratch, headroom.
    blk_bytes = chunk * b_tile * H_pad * 4
    vmem_bytes = 2 * 2 * blk_bytes + H_pad * H_pad * 4 + b_tile * H_pad * 4
    vmem_limit = int(min(max(vmem_bytes + (4 << 20), 8 << 20), 32 << 20))

    out_pad = pl.pallas_call(
        _rnn_kernel,
        out_shape=jax.ShapeDtypeStruct((S_pad, B_pad, H_pad), jnp.float32),
        grid=(num_b_tiles, num_chunks),
        in_specs=[
            pl.BlockSpec((chunk, b_tile, H_pad), lambda b, c: (c, b, 0)),
            pl.BlockSpec((H_pad, H_pad), lambda b, c: (0, 0)),
        ],
        out_specs=pl.BlockSpec((chunk, b_tile, H_pad), lambda b, c: (c, b, 0)),
        scratch_shapes=[pltpu.VMEM((b_tile, H_pad), jnp.float32)],
        compiler_params=pltpu.CompilerParams(
            dimension_semantics=("parallel", "arbitrary"),   # batch parallel, time serial
            vmem_limit_bytes=vmem_limit,
        ),
    )(xw_pad, whh_t)

    output = jnp.transpose(out_pad[:S, :B, :H], (1, 0, 2))   # (B, S, H) batch_first
    h_n = output[:, S - 1, :][None]                          # (1, B, H): last hidden == last output
    return output, h_n


def _reference_rnn(x, w_ih, w_hh):
    """Pure-JAX reference matching torch.nn.RNN(bias=False, batch_first=True)."""
    B, S, I = x.shape
    H = w_ih.shape[0]
    h0 = jnp.zeros((B, H), jnp.float32)

    def step(h, x_t):
        h_new = jnp.tanh(x_t @ w_ih.T + h @ w_hh.T)
        return h_new, h_new

    h_last, ys = lax.scan(step, h0, jnp.transpose(x, (1, 0, 2)))
    return jnp.transpose(ys, (1, 0, 2)), h_last[None]


if __name__ == "__main__":
    key = jax.random.PRNGKey(0)
    kx, kih, khh = jax.random.split(key, 3)

    batch, seq = 2, 8
    x = jax.random.normal(kx, (batch, seq, INPUT_SIZE), jnp.float32)

    # PyTorch nn.RNN default init: U(-1/sqrt(hidden), 1/sqrt(hidden)), bias=False
    bound = 1.0 / (HIDDEN_SIZE ** 0.5)
    w_ih = jax.random.uniform(kih, (HIDDEN_SIZE, INPUT_SIZE), jnp.float32, -bound, bound)
    w_hh = jax.random.uniform(khh, (HIDDEN_SIZE, HIDDEN_SIZE), jnp.float32, -bound, bound)

    rnn = jax.jit(torch_rnn_forward)   # jit so the tiny pads fuse with the projection einsum
    out, h_n = rnn(x, w_ih, w_hh)
    jax.block_until_ready((out, h_n))

    ref_out, ref_hn = _reference_rnn(x, w_ih, w_hh)
    assert out.shape == (batch, seq, HIDDEN_SIZE)
    assert h_n.shape == (1, batch, HIDDEN_SIZE)
    assert jnp.allclose(out, ref_out, atol=1e-5, rtol=1e-5)
    assert jnp.allclose(h_n, ref_hn, atol=1e-5, rtol=1e-5)

    print("KERNEL_OK")
</pallas_src>

<mosaic_0001>
module attributes {stable_mosaic.version = 11 : i64} {
  func.func @_rnn_kernel(%arg0: i32, %arg1: i32, %arg2: memref<8x8x128xf32, #tpu.memory_space<vmem>>, %arg3: memref<128x128xf32, #tpu.memory_space<vmem>>, %arg4: memref<8x8x128xf32, #tpu.memory_space<vmem>>, %arg5: memref<8x128xf32, #tpu.memory_space<vmem>>) attributes {dimension_semantics = [#tpu.dimension_semantics<parallel>, #tpu.dimension_semantics<arbitrary>], iteration_bounds = array<i64: 1, 1>, scalar_prefetch = 0 : i64, scratch_operands = 1 : i64, tpu.core_type = #tpu.core_type<tc>, window_params = [{transform_indices = @transform_0, window_bounds = array<i64: 8, 8, 128>}, {pipeline_mode = #tpu.pipeline_mode<synchronous>, transform_indices = @transform_1, window_bounds = array<i64: 128, 128>}, {transform_indices = @transform_2, window_bounds = array<i64: 8, 8, 128>}]} {
    %c0_i32 = arith.constant 0 : i32
    %0 = arith.cmpi eq, %arg1, %c0_i32 : i32
    %1 = arith.extui %0 : i1 to i32
    %c0_i32_0 = arith.constant 0 : i32
    %2 = arith.cmpi ne, %1, %c0_i32_0 : i32
    scf.if %2 {
      %cst_46 = arith.constant 0.000000e+00 : f32
      %86 = vector.broadcast %cst_46 : f32 to vector<8x128xf32>
      %c0_47 = arith.constant 0 : index
      %c0_48 = arith.constant 0 : index
      %87 = vector.load %arg5[%c0_47, %c0_48] : memref<8x128xf32, #tpu.memory_space<vmem>>, vector<8x128xf32>
      tpu.vector_store %arg5[%c0_47, %c0_48], %86 {strides = array<i32>} : memref<8x128xf32, #tpu.memory_space<vmem>>, vector<8x128xf32>,
    } else {
    }
    %c0 = arith.constant 0 : index
    %c0_1 = arith.constant 0 : index
    %3 = vector.load %arg3[%c0, %c0_1] : memref<128x128xf32, #tpu.memory_space<vmem>>, vector<128x128xf32>
    %c0_2 = arith.constant 0 : index
    %c0_3 = arith.constant 0 : index
    %4 = vector.load %arg5[%c0_2, %c0_3] : memref<8x128xf32, #tpu.memory_space<vmem>>, vector<8x128xf32>
    %c0_i32_4 = arith.constant 0 : i32
    %5 = arith.index_cast %c0_i32_4 : i32 to index
    %c0_5 = arith.constant 0 : index
    %c0_6 = arith.constant 0 : index
    %6 = vector.load %arg2[%5, %c0_5, %c0_6] : memref<8x8x128xf32, #tpu.memory_space<vmem>>, vector<1x8x128xf32>
    %7 = vector.shape_cast %6 : vector<1x8x128xf32> to vector<8x128xf32>
    %cst = arith.constant dense<0.000000e+00> : vector<8x128xf32>
    %8 = tpu.matmul %4, %3, %cst {dimension_numbers = #tpu.dot_dimension_numbers<[1], [0], [0], [1], [0, 0, 1, 1], [], []>} : vector<8x128xf32>, vector<128x128xf32>, vector<8x128xf32> -> vector<8x128xf32>
    %9 = arith.addf %7, %8 : vector<8x128xf32>
    %10 = math.tanh %9 : vector<8x128xf32>
    %11 = arith.index_cast %c0_i32_4 : i32 to index
    %c0_7 = arith.constant 0 : index
    %c0_8 = arith.constant 0 : index
    %12 = vector.load %arg4[%11, %c0_7, %c0_8] : memref<8x8x128xf32, #tpu.memory_space<vmem>>, vector<1x8x128xf32>
    %13 = vector.shape_cast %12 : vector<1x8x128xf32> to vector<8x128xf32>
    %14 = vector.shape_cast %10 : vector<8x128xf32> to vector<1x8x128xf32>
    tpu.vector_store %arg4[%11, %c0_7, %c0_8], %14 {strides = array<i32>} : memref<8x8x128xf32, #tpu.memory_space<vmem>>, vector<1x8x128xf32>,
    %c1_i32 = arith.constant 1 : i32
    %15 = arith.index_cast %c1_i32 : i32 to index
    %c0_9 = arith.constant 0 : index
    %c0_10 = arith.constant 0 : index
    %16 = vector.load %arg2[%15, %c0_9, %c0_10] : memref<8x8x128xf32, #tpu.memory_space<vmem>>, vector<1x8x128xf32>
    %17 = vector.shape_cast %16 : vector<1x8x128xf32> to vector<8x128xf32>
    %cst_11 = arith.constant dense<0.000000e+00> : vector<8x128xf32>
    %18 = tpu.matmul %10, %3, %cst_11 {dimension_numbers = #tpu.dot_dimension_numbers<[1], [0], [0], [1], [0, 0, 1, 1], [], []>} : vector<8x128xf32>, vector<128x128xf32>, vector<8x128xf32> -> vector<8x128xf32>
    %19 = arith.addf %17, %18 : vector<8x128xf32>
    %20 = math.tanh %19 : vector<8x128xf32>
    %21 = arith.index_cast %c1_i32 : i32 to index
    %c0_12 = arith.constant 0 : index
    %c0_13 = arith.constant 0 : index
    %22 = vector.load %arg4[%21, %c0_12, %c0_13] : memref<8x8x128xf32, #tpu.memory_space<vmem>>, vector<1x8x128xf32>
    %23 = vector.shape_cast %22 : vector<1x8x128xf32> to vector<8x128xf32>
    %24 = vector.shape_cast %20 : vector<8x128xf32> to vector<1x8x128xf32>
    tpu.vector_store %arg4[%21, %c0_12, %c0_13], %24 {strides = array<i32>} : memref<8x8x128xf32, #tpu.memory_space<vmem>>, vector<1x8x128xf32>,
    %c2_i32 = arith.constant 2 : i32
    %25 = arith.index_cast %c2_i32 : i32 to index
    %c0_14 = arith.constant 0 : index
    %c0_15 = arith.constant 0 : index
    %26 = vector.load %arg2[%25, %c0_14, %c0_15] : memref<8x8x128xf32, #tpu.memory_space<vmem>>, vector<1x8x128xf32>
    %27 = vector.shape_cast %26 : vector<1x8x128xf32> to vector<8x128xf32>
    %cst_16 = arith.constant dense<0.000000e+00> : vector<8x128xf32>
    %28 = tpu.matmul %20, %3, %cst_16 {dimension_numbers = #tpu.dot_dimension_numbers<[1], [0], [0], [1], [0, 0, 1, 1], [], []>} : vector<8x128xf32>, vector<128x128xf32>, vector<8x128xf32> -> vector<8x128xf32>
    %29 = arith.addf %27, %28 : vector<8x128xf32>
    %30 = math.tanh %29 : vector<8x128xf32>
    %31 = arith.index_cast %c2_i32 : i32 to index
    %c0_17 = arith.constant 0 : index
    %c0_18 = arith.constant 0 : index
    %32 = vector.load %arg4[%31, %c0_17, %c0_18] : memref<8x8x128xf32, #tpu.memory_space<vmem>>, vector<1x8x128xf32>
    %33 = vector.shape_cast %32 : vector<1x8x128xf32> to vector<8x128xf32>
    %34 = vector.shape_cast %30 : vector<8x128xf32> to vector<1x8x128xf32>
    tpu.vector_store %arg4[%31, %c0_17, %c0_18], %34 {strides = array<i32>} : memref<8x8x128xf32, #tpu.memory_space<vmem>>, vector<1x8x128xf32>,
    %c3_i32 = arith.constant 3 : i32
    %35 = arith.index_cast %c3_i32 : i32 to index
    %c0_19 = arith.constant 0 : index
    %c0_20 = arith.constant 0 : index
    %36 = vector.load %arg2[%35, %c0_19, %c0_20] : memref<8x8x128xf32, #tpu.memory_space<vmem>>, vector<1x8x128xf32>
    %37 = vector.shape_cast %36 : vector<1x8x128xf32> to vector<8x128xf32>
    %cst_21 = arith.constant dense<0.000000e+00> : vector<8x128xf32>
    %38 = tpu.matmul %30, %3, %cst_21 {dimension_numbers = #tpu.dot_dimension_numbers<[1], [0], [0], [1], [0, 0, 1, 1], [], []>} : vector<8x128xf32>, vector<128x128xf32>, vector<8x128xf32> -> vector<8x128xf32>
    %39 = arith.addf %37, %38 : vector<8x128xf32>
    %40 = math.tanh %39 : vector<8x128xf32>
    %41 = arith.index_cast %c3_i32 : i32 to index
    %c0_22 = arith.constant 0 : index
    %c0_23 = arith.constant 0 : index
    %42 = vector.load %arg4[%41, %c0_22, %c0_23] : memref<8x8x128xf32, #tpu.memory_space<vmem>>, vector<1x8x128xf32>
    %43 = vector.shape_cast %42 : vector<1x8x128xf32> to vector<8x128xf32>
    %44 = vector.shape_cast %40 : vector<8x128xf32> to vector<1x8x128xf32>
    tpu.vector_store %arg4[%41, %c0_22, %c0_23], %44 {strides = array<i32>} : memref<8x8x128xf32, #tpu.memory_space<vmem>>, vector<1x8x128xf32>,
    %c4_i32 = arith.constant 4 : i32
    %45 = arith.index_cast %c4_i32 : i32 to index
    %c0_24 = arith.constant 0 : index
    %c0_25 = arith.constant 0 : index
    %46 = vector.load %arg2[%45, %c0_24, %c0_25] : memref<8x8x128xf32, #tpu.memory_space<vmem>>, vector<1x8x128xf32>
    %47 = vector.shape_cast %46 : vector<1x8x128xf32> to vector<8x128xf32>
    %cst_26 = arith.constant dense<0.000000e+00> : vector<8x128xf32>
    %48 = tpu.matmul %40, %3, %cst_26 {dimension_numbers = #tpu.dot_dimension_numbers<[1], [0], [0], [1], [0, 0, 1, 1], [], []>} : vector<8x128xf32>, vector<128x128xf32>, vector<8x128xf32> -> vector<8x128xf32>
    %49 = arith.addf %47, %48 : vector<8x128xf32>
    %50 = math.tanh %49 : vector<8x128xf32>
    %51 = arith.index_cast %c4_i32 : i32 to index
    %c0_27 = arith.constant 0 : index
    %c0_28 = arith.constant 0 : index
    %52 = vector.load %arg4[%51, %c0_27, %c0_28] : memref<8x8x128xf32, #tpu.memory_space<vmem>>, vector<1x8x128xf32>
    %53 = vector.shape_cast %52 : vector<1x8x128xf32> to vector<8x128xf32>
    %54 = vector.shape_cast %50 : vector<8x128xf32> to vector<1x8x128xf32>
    tpu.vector_store %arg4[%51, %c0_27, %c0_28], %54 {strides = array<i32>} : memref<8x8x128xf32, #tpu.memory_space<vmem>>, vector<1x8x128xf32>,
    %c5_i32 = arith.constant 5 : i32
    %55 = arith.index_cast %c5_i32 : i32 to index
    %c0_29 = arith.constant 0 : index
    %c0_30 = arith.constant 0 : index
    %56 = vector.load %arg2[%55, %c0_29, %c0_30] : memref<8x8x128xf32, #tpu.memory_space<vmem>>, vector<1x8x128xf32>
    %57 = vector.shape_cast %56 : vector<1x8x128xf32> to vector<8x128xf32>
    %cst_31 = arith.constant dense<0.000000e+00> : vector<8x128xf32>
    %58 = tpu.matmul %50, %3, %cst_31 {dimension_numbers = #tpu.dot_dimension_numbers<[1], [0], [0], [1], [0, 0, 1, 1], [], []>} : vector<8x128xf32>, vector<128x128xf32>, vector<8x128xf32> -> vector<8x128xf32>
    %59 = arith.addf %57, %58 : vector<8x128xf32>
    %60 = math.tanh %59 : vector<8x128xf32>
    %61 = arith.index_cast %c5_i32 : i32 to index
    %c0_32 = arith.constant 0 : index
    %c0_33 = arith.constant 0 : index
    %62 = vector.load %arg4[%61, %c0_32, %c0_33] : memref<8x8x128xf32, #tpu.memory_space<vmem>>, vector<1x8x128xf32>
    %63 = vector.shape_cast %62 : vector<1x8x128xf32> to vector<8x128xf32>
    %64 = vector.shape_cast %60 : vector<8x128xf32> to vector<1x8x128xf32>
    tpu.vector_store %arg4[%61, %c0_32, %c0_33], %64 {strides = array<i32>} : memref<8x8x128xf32, #tpu.memory_space<vmem>>, vector<1x8x128xf32>,
    %c6_i32 = arith.constant 6 : i32
    %65 = arith.index_cast %c6_i32 : i32 to index
    %c0_34 = arith.constant 0 : index
    %c0_35 = arith.constant 0 : index
    %66 = vector.load %arg2[%65, %c0_34, %c0_35] : memref<8x8x128xf32, #tpu.memory_space<vmem>>, vector<1x8x128xf32>
    %67 = vector.shape_cast %66 : vector<1x8x128xf32> to vector<8x128xf32>
    %cst_36 = arith.constant dense<0.000000e+00> : vector<8x128xf32>
    %68 = tpu.matmul %60, %3, %cst_36 {dimension_numbers = #tpu.dot_dimension_numbers<[1], [0], [0], [1], [0, 0, 1, 1], [], []>} : vector<8x128xf32>, vector<128x128xf32>, vector<8x128xf32> -> vector<8x128xf32>
    %69 = arith.addf %67, %68 : vector<8x128xf32>
    %70 = math.tanh %69 : vector<8x128xf32>
    %71 = arith.index_cast %c6_i32 : i32 to index
    %c0_37 = arith.constant 0 : index
    %c0_38 = arith.constant 0 : index
    %72 = vector.load %arg4[%71, %c0_37, %c0_38] : memref<8x8x128xf32, #tpu.memory_space<vmem>>, vector<1x8x128xf32>
    %73 = vector.shape_cast %72 : vector<1x8x128xf32> to vector<8x128xf32>
    %74 = vector.shape_cast %70 : vector<8x128xf32> to vector<1x8x128xf32>
    tpu.vector_store %arg4[%71, %c0_37, %c0_38], %74 {strides = array<i32>} : memref<8x8x128xf32, #tpu.memory_space<vmem>>, vector<1x8x128xf32>,
    %c7_i32 = arith.constant 7 : i32
    %75 = arith.index_cast %c7_i32 : i32 to index
    %c0_39 = arith.constant 0 : index
    %c0_40 = arith.constant 0 : index
    %76 = vector.load %arg2[%75, %c0_39, %c0_40] : memref<8x8x128xf32, #tpu.memory_space<vmem>>, vector<1x8x128xf32>
    %77 = vector.shape_cast %76 : vector<1x8x128xf32> to vector<8x128xf32>
    %cst_41 = arith.constant dense<0.000000e+00> : vector<8x128xf32>
    %78 = tpu.matmul %70, %3, %cst_41 {dimension_numbers = #tpu.dot_dimension_numbers<[1], [0], [0], [1], [0, 0, 1, 1], [], []>} : vector<8x128xf32>, vector<128x128xf32>, vector<8x128xf32> -> vector<8x128xf32>
    %79 = arith.addf %77, %78 : vector<8x128xf32>
    %80 = math.tanh %79 : vector<8x128xf32>
    %81 = arith.index_cast %c7_i32 : i32 to index
    %c0_42 = arith.constant 0 : index
    %c0_43 = arith.constant 0 : index
    %82 = vector.load %arg4[%81, %c0_42, %c0_43] : memref<8x8x128xf32, #tpu.memory_space<vmem>>, vector<1x8x128xf32>
    %83 = vector.shape_cast %82 : vector<1x8x128xf32> to vector<8x128xf32>
    %84 = vector.shape_cast %80 : vector<8x128xf32> to vector<1x8x128xf32>
    tpu.vector_store %arg4[%81, %c0_42, %c0_43], %84 {strides = array<i32>} : memref<8x8x128xf32, #tpu.memory_space<vmem>>, vector<1x8x128xf32>,
    %c8_i32 = arith.constant 8 : i32
    %c0_44 = arith.constant 0 : index
    %c0_45 = arith.constant 0 : index
    %85 = vector.load %arg5[%c0_44, %c0_45] : memref<8x128xf32, #tpu.memory_space<vmem>>, vector<8x128xf32>
    tpu.vector_store %arg5[%c0_44, %c0_45], %80 {strides = array<i32>} : memref<8x128xf32, #tpu.memory_space<vmem>>, vector<8x128xf32>,
    return
  }
  func.func @transform_0(%arg0: i32, %arg1: i32) -> (i32, i32, i32) {
    %c0_i32 = arith.constant 0 : i32
    %c0_i32_0 = arith.constant 0 : i32
    return %arg1, %arg0, %c0_i32 : i32, i32, i32
  }
  func.func @transform_1(%arg0: i32, %arg1: i32) -> (i32, i32) {
    %c0_i32 = arith.constant 0 : i32
    %c0_i32_0 = arith.constant 0 : i32
    %c0_i32_1 = arith.constant 0 : i32
    return %c0_i32, %c0_i32_0 : i32, i32
  }
  func.func @transform_2(%arg0: i32, %arg1: i32) -> (i32, i32, i32) {
    %c0_i32 = arith.constant 0 : i32
    %c0_i32_0 = arith.constant 0 : i32
    return %arg1, %arg0, %c0_i32 : i32, i32, i32
  }
}

</mosaic_0001>

<llo_original>
// kernel: torch_rnn_forward.1
$region0: #{torch_rnn_forward.1}
  #allocation0 [shape = 'u32[]', space=smem, size = 0x4, offset = 0x4, fixed_abs, tag = 'smem constant byte address 0x4 - core index']
  #allocation1 [shape = 'u32[72,128]{1,0:T(1,128)}', space=vmem, size = 0x9000, scoped, tag = 'internal scratch']
  #allocation2 [shape = 'f32[8,128]{1,0:T(8,128)}', space=vmem, size = 0x1000, scoped, tag = 'scratch operand']
  %s0 = inlined_call_operand.vmem [shape: f32[8,8,128], index: 0, kind: input, shape index: {}]
  %s1 = inlined_call_operand.vmem [shape: f32[128,128], index: 1, kind: input, shape index: {}]
  %s2 = inlined_call_operand.vmem [shape: f32[8,8,128], index: 2, kind: output, shape index: {}]
  %s3 = sld [smem:[#allocation0]]
  $region22: #{torch_rnn_forward.1} parent=0
    _
  %s5 = ssub.s32 1, %s3
  %s6 = scalar_select 0, %s5, %s3
  // Predicated region
  $region2: #{torch_rnn_forward.1} parent=0 // pred_check
    _
  $region3: #{torch_rnn_forward.1} parent=0 // pred_check_branch
    %8 = sbr.rel (0) target = $region5
  $region4: #{torch_rnn_forward.1} parent=0 // pred_region
    _
  $region5: #{torch_rnn_forward.1} parent=0 // pred_fallthru
    _
  // Predicated region
  $region6: #{torch_rnn_forward.1} parent=0 // pred_check
    _
  $region7: #{torch_rnn_forward.1} parent=0 // pred_check_branch
    %10 = sbr.rel (0) target = $region9
  $region8: #{torch_rnn_forward.1} parent=0 // pred_region
    _
  $region9: #{torch_rnn_forward.1} parent=0 // pred_fallthru
    _
  %p11 = scmp.eq.s32.totalorder 0, 0
  // Predicated region
  $region10: #{torch_rnn_forward.1} parent=0 // pred_check
    %p12 = pneg %p11
  $region11: #{torch_rnn_forward.1} parent=0 // pred_check_branch
    %14 = sbr.rel (%p12) target = $region13
  $region12: #{torch_rnn_forward.1} parent=0 // pred_region
    %15 = vst [vmem:[#allocation2] sm:$0xff] 0.0
  $region13: #{torch_rnn_forward.1} parent=0 // pred_fallthru
    _
  %v16 = vld [vmem:[%s1] sm:$0xff]
  %v17 = vld [vmem:[%s1 + $0x8] sm:$0xff]
  %v18 = vld [vmem:[%s1 + $0x10] sm:$0xff]
  %v19 = vld [vmem:[%s1 + $0x18] sm:$0xff]
  %v20 = vld [vmem:[%s1 + $0x20] sm:$0xff]
  %v21 = vld [vmem:[%s1 + $0x28] sm:$0xff]
  %v22 = vld [vmem:[%s1 + $0x30] sm:$0xff]
  %v23 = vld [vmem:[%s1 + $0x38] sm:$0xff]
  %v24 = vld [vmem:[%s1 + $0x40] sm:$0xff]
  %v25 = vld [vmem:[%s1 + $0x48] sm:$0xff]
  %v26 = vld [vmem:[%s1 + $0x50] sm:$0xff]
  %v27 = vld [vmem:[%s1 + $0x58] sm:$0xff]
  %v28 = vld [vmem:[%s1 + $0x60] sm:$0xff]
  %v29 = vld [vmem:[%s1 + $0x68] sm:$0xff]
  %v30 = vld [vmem:[%s1 + $0x70] sm:$0xff]
  %v31 = vld [vmem:[%s1 + $0x78] sm:$0xff]
  %v32 = vld [vmem:[#allocation2] sm:$0xff]
  %v33 = vld [vmem:[%s0] sm:$0xff]
  %34 = vmatpush.msra.mxu0 %v31
  %35 = vmatpush.msra.mxu0 %v30
  %36 = vmatpush.msra.mxu0 %v29
  %37 = vmatpush.msra.mxu0 %v28
  %38 = vmatpush.msra.mxu0 %v27
  %39 = vmatpush.msra.mxu0 %v26
  %40 = vmatpush.msra.mxu0 %v25
  %41 = vmatpush.msra.mxu0 %v24
  %42 = vmatpush.msra.mxu0 %v23
  %43 = vmatpush.msra.mxu0 %v22
  %44 = vmatpush.msra.mxu0 %v21
  %45 = vmatpush.msra.mxu0 %v20
  %46 = vmatpush.msra.mxu0 %v19
  %47 = vmatpush.msra.mxu0 %v18
  %48 = vmatpush.msra.mxu0 %v17
  %49 = vmatpush.msra.mxu0 %v16
  %50 = vmatmul.f32.gmra.mxu0 %v32
  %v51 = vpop.f32.mrf.mxu0
  %v52 = vadd.f32 0.0, %v51
  %53 = vdwg.mxu0
  %v54 = vadd.f32 %v33, %v52
  %v55 = vtanh.pop %v54
  %56 = vst [vmem:[%s2] sm:$0xff] %v55
  %s57 = scalar_lea.vmem %s0, 8
  %v58 = vld [vmem:[%s57] sm:$0xff]
  %59 = vmatpush.msra.mxu0 %v31
  %60 = vmatpush.msra.mxu0 %v30
  %61 = vmatpush.msra.mxu0 %v29
  %62 = vmatpush.msra.mxu0 %v28
  %63 = vmatpush.msra.mxu0 %v27
  %64 = vmatpush.msra.mxu0 %v26
  %65 = vmatpush.msra.mxu0 %v25
  %66 = vmatpush.msra.mxu0 %v24
  %67 = vmatpush.msra.mxu0 %v23
  %68 = vmatpush.msra.mxu0 %v22
  %69 = vmatpush.msra.mxu0 %v21
  %70 = vmatpush.msra.mxu0 %v20
  %71 = vmatpush.msra.mxu0 %v19
  %72 = vmatpush.msra.mxu0 %v18
  %73 = vmatpush.msra.mxu0 %v17
  %74 = vmatpush.msra.mxu0 %v16
  %75 = vmatmul.f32.gmra.mxu0 %v55
  %v76 = vpop.f32.mrf.mxu0
  %v77 = vadd.f32 0.0, %v76
  %78 = vdwg.mxu0
  %v79 = vadd.f32 %v58, %v77
  %v80 = vtanh.pop %v79
  %s81 = scalar_lea.vmem %s2, 8
  %82 = vst [vmem:[%s81] sm:$0xff] %v80
  %s83 = scalar_lea.vmem %s0, 16
  %v84 = vld [vmem:[%s83] sm:$0xff]
  %85 = vmatpush.msra.mxu0 %v31
  %86 = vmatpush.msra.mxu0 %v30
  %87 = vmatpush.msra.mxu0 %v29
  %88 = vmatpush.msra.mxu0 %v28
  %89 = vmatpush.msra.mxu0 %v27
  %90 = vmatpush.msra.mxu0 %v26
  %91 = vmatpush.msra.mxu0 %v25
  %92 = vmatpush.msra.mxu0 %v24
  %93 = vmatpush.msra.mxu0 %v23
  %94 = vmatpush.msra.mxu0 %v22
  %95 = vmatpush.msra.mxu0 %v21
  %96 = vmatpush.msra.mxu0 %v20
  %97 = vmatpush.msra.mxu0 %v19
  %98 = vmatpush.msra.mxu0 %v18
  %99 = vmatpush.msra.mxu0 %v17
  %100 = vmatpush.msra.mxu0 %v16
  %101 = vmatmul.f32.gmra.mxu0 %v80
  %v102 = vpop.f32.mrf.mxu0
  %v103 = vadd.f32 0.0, %v102
  %104 = vdwg.mxu0
  %v105 = vadd.f32 %v84, %v103
  %v106 = vtanh.pop %v105
  %s107 = scalar_lea.vmem %s2, 16
  %108 = vst [vmem:[%s107] sm:$0xff] %v106
  %s109 = scalar_lea.vmem %s0, 24
  %v110 = vld [vmem:[%s109] sm:$0xff]
  %111 = vmatpush.msra.mxu0 %v31
  %112 = vmatpush.msra.mxu0 %v30
  %113 = vmatpush.msra.mxu0 %v29
  %114 = vmatpush.msra.mxu0 %v28
  %115 = vmatpush.msra.mxu0 %v27
  %116 = vmatpush.msra.mxu0 %v26
  %117 = vmatpush.msra.mxu0 %v25
  %118 = vmatpush.msra.mxu0 %v24
  %119 = vmatpush.msra.mxu0 %v23
  %120 = vmatpush.msra.mxu0 %v22
  %121 = vmatpush.msra.mxu0 %v21
  %122 = vmatpush.msra.mxu0 %v20
  %123 = vmatpush.msra.mxu0 %v19
  %124 = vmatpush.msra.mxu0 %v18
  %125 = vmatpush.msra.mxu0 %v17
  %126 = vmatpush.msra.mxu0 %v16
  %127 = vmatmul.f32.gmra.mxu0 %v106
  %v128 = vpop.f32.mrf.mxu0
  %v129 = vadd.f32 0.0, %v128
  %130 = vdwg.mxu0
  %v131 = vadd.f32 %v110, %v129
  %v132 = vtanh.pop %v131
  %s133 = scalar_lea.vmem %s2, 24
  %134 = vst [vmem:[%s133] sm:$0xff] %v132
  %s135 = scalar_lea.vmem %s0, 32
  %v136 = vld [vmem:[%s135] sm:$0xff]
  %137 = vmatpush.msra.mxu0 %v31
  %138 = vmatpush.msra.mxu0 %v30
  %139 = vmatpush.msra.mxu0 %v29
  %140 = vmatpush.msra.mxu0 %v28
  %141 = vmatpush.msra.mxu0 %v27
  %142 = vmatpush.msra.mxu0 %v26
  %143 = vmatpush.msra.mxu0 %v25
  %144 = vmatpush.msra.mxu0 %v24
  %145 = vmatpush.msra.mxu0 %v23
  %146 = vmatpush.msra.mxu0 %v22
  %147 = vmatpush.msra.mxu0 %v21
  %148 = vmatpush.msra.mxu0 %v20
  %149 = vmatpush.msra.mxu0 %v19
  %150 = vmatpush.msra.mxu0 %v18
  %151 = vmatpush.msra.mxu0 %v17
  %152 = vmatpush.msra.mxu0 %v16
  %153 = vmatmul.f32.gmra.mxu0 %v132
  %v154 = vpop.f32.mrf.mxu0
  %v155 = vadd.f32 0.0, %v154
  %156 = vdwg.mxu0
  %v157 = vadd.f32 %v136, %v155
  %v158 = vtanh.pop %v157
  %s159 = scalar_lea.vmem %s2, 32
  %160 = vst [vmem:[%s159] sm:$0xff] %v158
  %s161 = scalar_lea.vmem %s0, 40
  %v162 = vld [vmem:[%s161] sm:$0xff]
  %163 = vmatpush.msra.mxu0 %v31
  %164 = vmatpush.msra.mxu0 %v30
  %165 = vmatpush.msra.mxu0 %v29
  %166 = vmatpush.msra.mxu0 %v28
  %167 = vmatpush.msra.mxu0 %v27
  %168 = vmatpush.msra.mxu0 %v26
  %169 = vmatpush.msra.mxu0 %v25
  %170 = vmatpush.msra.mxu0 %v24
  %171 = vmatpush.msra.mxu0 %v23
  %172 = vmatpush.msra.mxu0 %v22
  %173 = vmatpush.msra.mxu0 %v21
  %174 = vmatpush.msra.mxu0 %v20
  %175 = vmatpush.msra.mxu0 %v19
  %176 = vmatpush.msra.mxu0 %v18
  %177 = vmatpush.msra.mxu0 %v17
  %178 = vmatpush.msra.mxu0 %v16
  %179 = vmatmul.f32.gmra.mxu0 %v158
  %v180 = vpop.f32.mrf.mxu0
  %v181 = vadd.f32 0.0, %v180
  %182 = vdwg.mxu0
  %v183 = vadd.f32 %v162, %v181
  %v184 = vtanh.pop %v183
  %s185 = scalar_lea.vmem %s2, 40
  %186 = vst [vmem:[%s185] sm:$0xff] %v184
  %s187 = scalar_lea.vmem %s0, 48
  %v188 = vld [vmem:[%s187] sm:$0xff]
  %189 = vmatpush.msra.mxu0 %v31
  %190 = vmatpush.msra.mxu0 %v30
  %191 = vmatpush.msra.mxu0 %v29
  %192 = vmatpush.msra.mxu0 %v28
  %193 = vmatpush.msra.mxu0 %v27
  %194 = vmatpush.msra.mxu0 %v26
  %195 = vmatpush.msra.mxu0 %v25
  %196 = vmatpush.msra.mxu0 %v24
  %197 = vmatpush.msra.mxu0 %v23
  %198 = vmatpush.msra.mxu0 %v22
  %199 = vmatpush.msra.mxu0 %v21
  %200 = vmatpush.msra.mxu0 %v20
  %201 = vmatpush.msra.mxu0 %v19
  %202 = vmatpush.msra.mxu0 %v18
  %203 = vmatpush.msra.mxu0 %v17
  %204 = vmatpush.msra.mxu0 %v16
  %205 = vmatmul.f32.gmra.mxu0 %v184
  %v206 = vpop.f32.mrf.mxu0
  %v207 = vadd.f32 0.0, %v206
  %208 = vdwg.mxu0
  %v209 = vadd.f32 %v188, %v207
  %v210 = vtanh.pop %v209
  %s211 = scalar_lea.vmem %s2, 48
  %212 = vst [vmem:[%s211] sm:$0xff] %v210
  %s213 = scalar_lea.vmem %s0, 56
  %v214 = vld [vmem:[%s213] sm:$0xff]
  %215 = vmatpush.msra.mxu0 %v31
  %216 = vmatpush.msra.mxu0 %v30
  %217 = vmatpush.msra.mxu0 %v29
  %218 = vmatpush.msra.mxu0 %v28
  %219 = vmatpush.msra.mxu0 %v27
  %220 = vmatpush.msra.mxu0 %v26
  %221 = vmatpush.msra.mxu0 %v25
  %222 = vmatpush.msra.mxu0 %v24
  %223 = vmatpush.msra.mxu0 %v23
  %224 = vmatpush.msra.mxu0 %v22
  %225 = vmatpush.msra.mxu0 %v21
  %226 = vmatpush.msra.mxu0 %v20
  %227 = vmatpush.msra.mxu0 %v19
  %228 = vmatpush.msra.mxu0 %v18
  %229 = vmatpush.msra.mxu0 %v17
  %230 = vmatpush.msra.mxu0 %v16
  %231 = vmatmul.f32.gmra.mxu0 %v210
  %v232 = vpop.f32.mrf.mxu0
  %v233 = vadd.f32 0.0, %v232
  %234 = vdwg.mxu0
  %v235 = vadd.f32 %v214, %v233
  %v236 = vtanh.pop %v235
  %s237 = scalar_lea.vmem %s2, 56
  %238 = vst [vmem:[%s237] sm:$0xff] %v236
  %239 = vst [vmem:[#allocation2] sm:$0xff] %v236
  // Predicated region
  $region14: #{torch_rnn_forward.1} parent=0 // pred_check
    _
  $region15: #{torch_rnn_forward.1} parent=0 // pred_check_branch
    %241 = sbr.rel (0) target = $region17
  $region16: #{torch_rnn_forward.1} parent=0 // pred_region
    _
  $region17: #{torch_rnn_forward.1} parent=0 // pred_fallthru
    _
  // Predicated region
  $region18: #{torch_rnn_forward.1} parent=0 // pred_check
    _
  $region19: #{torch_rnn_forward.1} parent=0 // pred_check_branch
    %243 = sbr.rel (0) target = $region21
  $region20: #{torch_rnn_forward.1} parent=0 // pred_region
    _
  $region21: #{torch_rnn_forward.1} parent=0 // pred_fallthru
    _

</llo_original>
